<compile_context>
chip_gen: v6e
topology: v6e:2x2x1
jax: 0.10.0
libtpu: 0.0.40
codegen_flags: <defaults>
</compile_context>

<pallas_src>
import numpy as np
import jax
import jax.numpy as jnp
from jax.experimental import pallas as pl
from jax.experimental.pallas import tpu as pltpu


# ----------------------------------------------------------------------------
# Small helpers (padding / tile picking)
# ----------------------------------------------------------------------------
def _round_up(x, m):
    return ((x + m - 1) // m) * m


def _pad_axis(a, axis, new_size):
    if a.shape[axis] == new_size:
        return a
    pad = [(0, 0)] * a.ndim
    pad[axis] = (0, new_size - a.shape[axis])
    return jnp.pad(a, pad)


def _pad_gates_last(a, H, H_pad):
    """(..., 4*H) -> (..., 4*H_pad): each (i,f,g,o) block lands at k*H_pad."""
    lead = a.shape[:-1]
    a4 = a.reshape(*lead, 4, H)
    a4 = _pad_axis(a4, a4.ndim - 1, H_pad)
    return a4.reshape(*lead, 4 * H_pad)


def _largest_tile(dim, unit, max_tile):
    """Largest multiple of `unit` that divides `dim` and is <= max_tile.
    `dim` is always pre-padded to a multiple of `unit`."""
    t = min(dim, max_tile)
    t -= t % unit
    t = max(t, unit)
    while dim % t:
        t -= unit
    return t


def _pick_batch_tile(Bp, max_bt=256):
    """>=2 batch tiles when possible (v7x megacore), each a multiple of 8."""
    if Bp <= 8:
        return Bp
    bt = min(max_bt, _round_up(Bp // 2, 8))
    while Bp % bt:
        bt -= 8
    return max(bt, 8)


# ----------------------------------------------------------------------------
# Pallas kernels
# ----------------------------------------------------------------------------
def linear_kernel(x_ref, w_ref, b_ref, o_ref, acc_ref):
    """y = x @ w + b, K-tiled with an f32 VMEM accumulator."""
    @pl.when(pl.program_id(2) == 0)
    def _():
        acc_ref[...] = jnp.zeros_like(acc_ref)

    acc_ref[...] += jnp.dot(x_ref[...], w_ref[...],
                            preferred_element_type=jnp.float32)

    @pl.when(pl.program_id(2) == pl.num_programs(2) - 1)
    def _():
        o_ref[...] = (acc_ref[...]
                      + b_ref[...].astype(jnp.float32)).astype(o_ref.dtype)


def lstm_kernel(xw_ref, h0_ref, c0_ref, whh_ref, out_ref, h_scr, c_scr):
    """One time-chunk of the recurrence; h/c carried in VMEM scratch.

    xw_ref : (tc, bt, 4*Hp) bf16  -- precomputed x @ W_ih + bias
    h0/c0  : (bt, Hp) f32
    whh    : (Hp, 4*Hp) bf16
    out    : (tc, bt, Hp) bf16
    h/c scr: (bt, Hp) f32 scratch, persists across the time-chunk grid axis.
    """
    tchunk = pl.program_id(1)

    @pl.when(tchunk == 0)
    def _():
        h_scr[...] = h0_ref[...]
        c_scr[...] = c0_ref[...]

    Hp = h_scr.shape[1]
    TC = xw_ref.shape[0]
    whh = whh_ref[...]                       # hoist weight load out of the loop

    def step(t, carry):
        h, c = carry                         # f32
        gates = (xw_ref[t].astype(jnp.float32)
                 + jnp.dot(h.astype(jnp.bfloat16), whh,
                           preferred_element_type=jnp.float32))
        i_g = jax.nn.sigmoid(gates[:, 0 * Hp:1 * Hp])
        f_g = jax.nn.sigmoid(gates[:, 1 * Hp:2 * Hp])
        g_g = jnp.tanh(gates[:, 2 * Hp:3 * Hp])
        o_g = jax.nn.sigmoid(gates[:, 3 * Hp:4 * Hp])
        c_new = f_g * c + i_g * g_g
        h_new = o_g * jnp.tanh(c_new)
        out_ref[t] = h_new.astype(out_ref.dtype)
        return (h_new, c_new)

    h_fin, c_fin = jax.lax.fori_loop(0, TC, step,
                                     (h_scr[...], c_scr[...]), unroll=2)
    h_scr[...] = h_fin
    c_scr[...] = c_fin


# ----------------------------------------------------------------------------
# Wrappers
# ----------------------------------------------------------------------------
def linear_pallas(x, w_t, b, *, out_dtype=jnp.float32,
                  max_tm=256, max_tn=512, max_tk=512):
    """Tiled y = x @ w_t + b.  All dims must be (8, 128)-padded.

    Tile maxima are conservative for v7x's 64 MiB VMEM; on v6e (128 MiB) they
    can be raised toward 512/1024 together with vmem_limit_bytes.
    """
    N, K = x.shape
    M = w_t.shape[1]
    tm = _largest_tile(N, 8, max_tm)
    tn = _largest_tile(M, 128, max_tn)
    tk = _largest_tile(K, 128, max_tk)
    return pl.pallas_call(
        linear_kernel,
        out_shape=jax.ShapeDtypeStruct((N, M), out_dtype),
        grid=(N // tm, M // tn, K // tk),
        in_specs=[pl.BlockSpec((tm, tk), lambda i, j, k: (i, k)),
                  pl.BlockSpec((tk, tn), lambda i, j, k: (k, j)),
                  pl.BlockSpec((1, tn), lambda i, j, k: (0, j))],
        out_specs=pl.BlockSpec((tm, tn), lambda i, j, k: (i, j)),
        scratch_shapes=[pltpu.VMEM((tm, tn), jnp.float32)],
        compiler_params=pltpu.CompilerParams(
            dimension_semantics=("parallel", "parallel", "arbitrary")),
    )(x, w_t, b)


def lstm_pallas(xw, h0, c0, whh_t, *, time_chunk, batch_tile=None):
    """Full recurrence.  Grid = (batch tiles [parallel], time chunks [arbitrary]);
    h/c live in VMEM scratch across time chunks."""
    Tp, Bp, G = xw.shape
    Hp = h0.shape[1]
    bt = batch_tile if batch_tile is not None else _pick_batch_tile(Bp)
    tc = time_chunk
    assert Bp % bt == 0 and bt % 8 == 0 and Tp % tc == 0
    return pl.pallas_call(
        lstm_kernel,
        out_shape=jax.ShapeDtypeStruct((Tp, Bp, Hp), jnp.bfloat16),
        grid=(Bp // bt, Tp // tc),
        in_specs=[
            pl.BlockSpec((tc, bt, G), lambda b, t: (t, b, 0)),   # xW (time-major)
            pl.BlockSpec((bt, Hp), lambda b, t: (b, 0)),         # h0
            pl.BlockSpec((bt, Hp), lambda b, t: (b, 0)),         # c0
            pl.BlockSpec((Hp, G), lambda b, t: (0, 0)),          # W_hh^T
        ],
        out_specs=pl.BlockSpec((tc, bt, Hp), lambda b, t: (t, b, 0)),
        scratch_shapes=[pltpu.VMEM((bt, Hp), jnp.float32),       # h carry
                        pltpu.VMEM((bt, Hp), jnp.float32)],      # c carry
        compiler_params=pltpu.CompilerParams(
            dimension_semantics=("parallel", "arbitrary")),
    )(xw, h0, c0, whh_t)


# ----------------------------------------------------------------------------
# Parameter padding to TPU-friendly (8, 128) multiples; matmul weights -> bf16
# ----------------------------------------------------------------------------
def pad_params(params, E, H, V):
    LANE = 128
    E_p, H_p, V_p = _round_up(E, LANE), _round_up(H, LANE), _round_up(V, LANE)
    bf16 = jnp.bfloat16

    w_ih = _pad_axis(_pad_gates_last(params["w_ih_t"], H, H_p), 0, E_p).astype(bf16)
    w_hh = _pad_axis(_pad_gates_last(params["w_hh_t"], H, H_p), 0, H_p).astype(bf16)
    lstm_b = _pad_gates_last(params["lstm_b"], H, H_p)                    # f32

    # fused [init_h | init_c] projection: (E_p, 2*H_p)
    init_w = jnp.concatenate([_pad_axis(params["init_h_w_t"], 1, H_p),
                              _pad_axis(params["init_c_w_t"], 1, H_p)], axis=1)
    init_w = _pad_axis(init_w, 0, E_p).astype(bf16)
    init_b = jnp.concatenate([_pad_axis(params["init_h_b"], 1, H_p),
                              _pad_axis(params["init_c_b"], 1, H_p)], axis=1)  # f32

    lin_w = _pad_axis(_pad_axis(params["lin_w_t"], 1, V_p), 0, H_p).astype(bf16)
    lin_b = _pad_axis(params["lin_b"], 1, V_p)                            # f32
    embed = _pad_axis(params["embed"], 1, E_p).astype(bf16)

    return dict(embed=embed, w_ih_t=w_ih, w_hh_t=w_hh, lstm_b=lstm_b,
                init_w_t=init_w, init_b=init_b, lin_w_t=lin_w, lin_b=lin_b,
                E=E, H=H, V=V, E_p=E_p, H_p=H_p, V_p=V_p)


# ----------------------------------------------------------------------------
# DecoderRNN forward (glue in plain JAX, hot paths in Pallas)
# ----------------------------------------------------------------------------
def decoder_rnn_forward(pp, features, captions, lengths, *, max_time_chunk=32):
    """Mirrors DecoderRNN.forward: returns (sum(lengths), vocab_size) logits in
    PyTorch pack_padded_sequence (batch_first=True, enforce_sorted=False)
    data order.  `lengths` must be concrete (host) values."""
    B, T = captions.shape
    E_p, H_p = pp["E_p"], pp["H_p"]
    B_p = _round_up(B, 8)
    tc = min(max_time_chunk, T)
    T_p = _round_up(T, tc)

    cap_p = jnp.pad(jnp.asarray(captions, jnp.int32),
                    ((0, B_p - B), (0, T_p - T)))                  # (B_p, T_p)
    feat_p = _pad_axis(_pad_axis(features, 1, E_p), 0, B_p)
    feat_p = feat_p.astype(jnp.bfloat16)                           # (B_p, E_p)

    # Fused init_h / init_c projection (single Pallas linear), f32 output.
    hc0 = linear_pallas(feat_p, pp["init_w_t"], pp["init_b"],
                        out_dtype=jnp.float32)                     # (B_p, 2H_p)
    h0, c0 = hc0[:, :H_p], hc0[:, H_p:]

    # Embedding lookup built time-major directly, then the input projection is
    # hoisted out of the recurrence as one big (T_p*B_p, E_p) @ (E_p, 4H_p)
    # matmul with the LSTM bias folded in; handoff buffer stored as bf16.
    emb_tm = jnp.take(pp["embed"], cap_p.T, axis=0)                # (T_p, B_p, E_p)
    x_tb = emb_tm.reshape(T_p * B_p, E_p)
    xw = linear_pallas(x_tb, pp["w_ih_t"], pp["lstm_b"],
                       out_dtype=jnp.bfloat16)                     # (T_p*B_p, 4H_p)
    xw = xw.reshape(T_p, B_p, 4 * H_p)

    # LSTM recurrence: time-chunked streaming, h/c in VMEM scratch.
    hiddens = lstm_pallas(xw, h0, c0, pp["w_hh_t"],
                          time_chunk=tc)                           # (T_p, B_p, H_p) bf16

    # Reproduce packed-sequence data ordering (host-side indices).
    lengths_np = np.asarray(lengths)
    order = np.argsort(-lengths_np, kind="stable")
    flat_idx = [t * B_p + int(b)
                for t in range(int(lengths_np.max()))
                for b in order if lengths_np[b] > t]
    N = len(flat_idx)
    N_p = _round_up(N, 8)
    flat_idx = np.asarray(flat_idx + [0] * (N_p - N), dtype=np.int32)

    # TODO(synk): fuse this row gather into the vocab linear's DMA (scalar
    # prefetch + Element index_map); kept as an XLA gather for now.
    packed_h = hiddens.reshape(T_p * B_p, H_p)[jnp.asarray(flat_idx)]  # (N_p, H_p)

    # Final vocab projection (tiled Pallas linear), then strip padding.
    logits = linear_pallas(packed_h, pp["lin_w_t"], pp["lin_b"],
                           out_dtype=jnp.float32)                  # (N_p, V_p)
    return logits[:N, :pp["V"]]


# ----------------------------------------------------------------------------
# Pure-JAX f32 reference (for correctness check), unpadded params
# ----------------------------------------------------------------------------
def decoder_rnn_reference(params, features, captions, lengths):
    emb = jnp.take(params["embed"], captions, axis=0)
    x_tbe = jnp.transpose(emb, (1, 0, 2))
    h0 = features @ params["init_h_w_t"] + params["init_h_b"][0]
    c0 = features @ params["init_c_w_t"] + params["init_c_b"][0]

    def step(carry, x_t):
        h, c = carry
        gates = x_t @ params["w_ih_t"] + h @ params["w_hh_t"] + params["lstm_b"][0]
        i, f, g, o = jnp.split(gates, 4, axis=1)
        i, f, o = jax.nn.sigmoid(i), jax.nn.sigmoid(f), jax.nn.sigmoid(o)
        g = jnp.tanh(g)
        c = f * c + i * g
        h = o * jnp.tanh(c)
        return (h, c), h

    _, hs = jax.lax.scan(step, (h0, c0), x_tbe)               # (T, B, H)

    lengths_np = np.asarray(lengths)
    order = np.argsort(-lengths_np, kind="stable")
    time_idx, batch_idx = [], []
    for t in range(int(lengths_np.max())):
        for b in order:
            if lengths_np[b] > t:
                time_idx.append(t)
                batch_idx.append(int(b))
    packed_h = hs[jnp.array(time_idx), jnp.array(batch_idx), :]
    return packed_h @ params["lin_w_t"] + params["lin_b"][0]


# ----------------------------------------------------------------------------
# Main
# ----------------------------------------------------------------------------
if __name__ == "__main__":
    embed_size, hidden_size, vocab_size = 32, 32, 48
    B, T = 2, 8
    lengths = [5, 8]   # per-batch valid lengths (<= T)

    key = jax.random.PRNGKey(0)
    ks = jax.random.split(key, 12)
    s = 0.1
    params = {
        "embed":      s * jax.random.normal(ks[0], (vocab_size, embed_size), jnp.float32),
        # LSTM weights, PyTorch gate order (i, f, g, o), pre-transposed.
        "w_ih_t":     s * jax.random.normal(ks[1], (embed_size, 4 * hidden_size), jnp.float32),
        "w_hh_t":     s * jax.random.normal(ks[2], (hidden_size, 4 * hidden_size), jnp.float32),
        "lstm_b":     s * jax.random.normal(ks[3], (1, 4 * hidden_size), jnp.float32),  # b_ih + b_hh folded
        "lin_w_t":    s * jax.random.normal(ks[4], (hidden_size, vocab_size), jnp.float32),
        "lin_b":      s * jax.random.normal(ks[5], (1, vocab_size), jnp.float32),
        "init_h_w_t": s * jax.random.normal(ks[6], (embed_size, hidden_size), jnp.float32),
        "init_h_b":   s * jax.random.normal(ks[7], (1, hidden_size), jnp.float32),
        "init_c_w_t": s * jax.random.normal(ks[8], (embed_size, hidden_size), jnp.float32),
        "init_c_b":   s * jax.random.normal(ks[9], (1, hidden_size), jnp.float32),
    }

    features = jax.random.normal(ks[10], (B, embed_size), jnp.float32)
    captions = jax.random.randint(ks[11], (B, T), 0, vocab_size, jnp.int32)

    padded_params = pad_params(params, embed_size, hidden_size, vocab_size)

    out = decoder_rnn_forward(padded_params, features, captions, lengths)
    out = jax.block_until_ready(out)

    ref = decoder_rnn_reference(params, features, captions, lengths)
    assert out.shape == (sum(lengths), vocab_size), out.shape
    # bf16 MXU operands (f32 accumulation) -> loosened tolerance vs f32 reference.
    np.testing.assert_allclose(np.asarray(out), np.asarray(ref),
                               rtol=2e-2, atol=2e-2)

    print("KERNEL_OK")
</pallas_src>

<mosaic_0001>
module attributes {stable_mosaic.version = 11 : i64} {
  func.func @linear_kernel(%arg0: i32, %arg1: i32, %arg2: i32, %arg3: memref<8x128xbf16, #tpu.memory_space<vmem>>, %arg4: memref<128x256xbf16, #tpu.memory_space<vmem>>, %arg5: memref<1x256xf32, #tpu.memory_space<vmem>>, %arg6: memref<8x256xf32, #tpu.memory_space<vmem>>, %arg7: memref<8x256xf32, #tpu.memory_space<vmem>>) attributes {dimension_semantics = [#tpu.dimension_semantics<parallel>, #tpu.dimension_semantics<parallel>, #tpu.dimension_semantics<arbitrary>], iteration_bounds = array<i64: 1, 1, 1>, scalar_prefetch = 0 : i64, scratch_operands = 1 : i64, tpu.core_type = #tpu.core_type<tc>, window_params = [{transform_indices = @transform_0, window_bounds = array<i64: 8, 128>}, {transform_indices = @transform_1, window_bounds = array<i64: 128, 256>}, {transform_indices = @transform_2, window_bounds = array<i64: 1, 256>}, {transform_indices = @transform_3, window_bounds = array<i64: 8, 256>}]} {
    %c0_i32 = arith.constant 0 : i32
    %0 = arith.cmpi eq, %arg2, %c0_i32 : i32
    %1 = arith.extui %0 : i1 to i32
    %c0_i32_0 = arith.constant 0 : i32
    %2 = arith.cmpi ne, %1, %c0_i32_0 : i32
    scf.if %2 {
      %cst_10 = arith.constant 0.000000e+00 : f32
      %12 = vector.broadcast %cst_10 : f32 to vector<8x256xf32>
      %c0_11 = arith.constant 0 : index
      %c0_12 = arith.constant 0 : index
      %13 = vector.load %arg7[%c0_11, %c0_12] : memref<8x256xf32, #tpu.memory_space<vmem>>, vector<8x256xf32>
      tpu.vector_store %arg7[%c0_11, %c0_12], %12 {strides = array<i32>} : memref<8x256xf32, #tpu.memory_space<vmem>>, vector<8x256xf32>,
    } else {
    }
    %c0 = arith.constant 0 : index
    %c0_1 = arith.constant 0 : index
    %3 = vector.load %arg7[%c0, %c0_1] : memref<8x256xf32, #tpu.memory_space<vmem>>, vector<8x256xf32>
    %c0_2 = arith.constant 0 : index
    %c0_3 = arith.constant 0 : index
    %4 = vector.load %arg3[%c0_2, %c0_3] : memref<8x128xbf16, #tpu.memory_space<vmem>>, vector<8x128xbf16>
    %c0_4 = arith.constant 0 : index
    %c0_5 = arith.constant 0 : index
    %5 = vector.load %arg4[%c0_4, %c0_5] : memref<128x256xbf16, #tpu.memory_space<vmem>>, vector<128x256xbf16>
    %cst = arith.constant dense<0.000000e+00> : vector<8x256xf32>
    %6 = tpu.matmul %4, %5, %cst {dimension_numbers = #tpu.dot_dimension_numbers<[1], [0], [0], [1], [0, 0, 1, 1], [], []>} : vector<8x128xbf16>, vector<128x256xbf16>, vector<8x256xf32> -> vector<8x256xf32>
    %7 = arith.addf %3, %6 : vector<8x256xf32>
    %c0_6 = arith.constant 0 : index
    %c0_7 = arith.constant 0 : index
    %8 = vector.load %arg7[%c0_6, %c0_7] : memref<8x256xf32, #tpu.memory_space<vmem>>, vector<8x256xf32>
    tpu.vector_store %arg7[%c0_6, %c0_7], %7 {strides = array<i32>} : memref<8x256xf32, #tpu.memory_space<vmem>>, vector<8x256xf32>,
    %c0_i32_8 = arith.constant 0 : i32
    %9 = arith.cmpi eq, %arg2, %c0_i32_8 : i32
    %10 = arith.extui %9 : i1 to i32
    %c0_i32_9 = arith.constant 0 : i32
    %11 = arith.cmpi ne, %10, %c0_i32_9 : i32
    scf.if %11 {
      %c0_10 = arith.constant 0 : index
      %c0_11 = arith.constant 0 : index
      %12 = vector.load %arg7[%c0_10, %c0_11] : memref<8x256xf32, #tpu.memory_space<vmem>>, vector<8x256xf32>
      %c0_12 = arith.constant 0 : index
      %c0_13 = arith.constant 0 : index
      %13 = vector.load %arg5[%c0_12, %c0_13] : memref<1x256xf32, #tpu.memory_space<vmem>>, vector<1x256xf32>
      %14 = vector.broadcast %13 : vector<1x256xf32> to vector<8x256xf32>
      %15 = arith.addf %12, %14 : vector<8x256xf32>
      %c0_14 = arith.constant 0 : index
      %c0_15 = arith.constant 0 : index
      %16 = vector.load %arg6[%c0_14, %c0_15] : memref<8x256xf32, #tpu.memory_space<vmem>>, vector<8x256xf32>
      tpu.vector_store %arg6[%c0_14, %c0_15], %15 {strides = array<i32>} : memref<8x256xf32, #tpu.memory_space<vmem>>, vector<8x256xf32>,
    } else {
    }
    return
  }
  func.func @transform_0(%arg0: i32, %arg1: i32, %arg2: i32) -> (i32, i32) {
    %c0_i32 = arith.constant 0 : i32
    return %arg0, %arg2 : i32, i32
  }
  func.func @transform_1(%arg0: i32, %arg1: i32, %arg2: i32) -> (i32, i32) {
    %c0_i32 = arith.constant 0 : i32
    return %arg2, %arg1 : i32, i32
  }
  func.func @transform_2(%arg0: i32, %arg1: i32, %arg2: i32) -> (i32, i32) {
    %c0_i32 = arith.constant 0 : i32
    %c0_i32_0 = arith.constant 0 : i32
    return %c0_i32, %arg1 : i32, i32
  }
  func.func @transform_3(%arg0: i32, %arg1: i32, %arg2: i32) -> (i32, i32) {
    %c0_i32 = arith.constant 0 : i32
    return %arg0, %arg1 : i32, i32
  }
}

</mosaic_0001>

<llo_original>
// kernel: tpu_custom_call.1
$region0: #{tpu_custom_call.1}
  #allocation0 [shape = 'u32[]', space=smem, size = 0x4, offset = 0x4, fixed_abs, tag = 'smem constant byte address 0x4 - core index']
  #allocation1 [shape = 'u32[144,128]{1,0:T(1,128)}', space=vmem, size = 0x12000, scoped, tag = 'internal scratch']
  #allocation2 [shape = 'f32[8,256]{1,0:T(8,128)}', space=vmem, size = 0x2000, scoped, tag = 'scratch operand']
  %s0 = inlined_call_operand.hbm [shape: bf16[8,128], index: 0, kind: input, shape index: {}]
  %s1 = inlined_call_operand.hbm [shape: bf16[128,256], index: 1, kind: input, shape index: {}]
  %s2 = inlined_call_operand.vmem [shape: f32[1,256], index: 2, kind: input, shape index: {}]
  %s3 = inlined_call_operand.hbm [shape: f32[8,256], index: 3, kind: output, shape index: {}]
  %s4 = sld [smem:[#allocation0]]
  $region38: #{tpu_custom_call.1} parent=0
    _
  %s6 = ssub.s32 1, %s4
  %s7 = scalar_select 0, %s6, %s4
  $region1: #{tpu_custom_call.1} parent=0
    #allocation3 [shape = 'u8[2048]{0}', space=vmem, size = 0x800, scoped, tag = 'input window, operand 0, single buffered']
    #allocation4 [shape = 's32[1]{0}', space=sflag, size = 0x4, scoped, tag = 'scoped memory for tpu_custom_call.1']
    #allocation5 [shape = 's32[1]{0}', space=sflag, size = 0x4, scoped, tag = 'scoped memory for tpu_custom_call.1']
    #allocation6 [shape = 'u8[65536]{0}', space=vmem, size = 0x10000, scoped, tag = 'input window, operand 1, single buffered']
    #allocation7 [shape = 's32[1]{0}', space=sflag, size = 0x4, scoped, tag = 'scoped memory for tpu_custom_call.1']
    #allocation8 [shape = 'u8[8192]{0}', space=vmem, size = 0x2000, scoped, tag = 'output window, operand 0, single buffered']
    %8 = vsyncpa [#allocation4], 0
    %9 = vsyncpa [#allocation7], 0
    %10 = vsyncpa [#allocation5], 0
    // Predicated region
    $region2: #{tpu_custom_call.1} parent=1 // pred_check
      _
    $region3: #{tpu_custom_call.1} parent=1 // pred_check_branch
      %12 = sbr.rel (0) target = $region5
    $region4: #{tpu_custom_call.1} parent=1 // pred_region
      %s14 = ssub.s32 64, 64
      %15 = vsyncadd [#allocation4], %s14
      %s17 = sshll.u32 [#allocation3], 4
      %s18 = int_to_ptr.vmem [resolvable:$true] %s17
      %20 = dma.hbm_to_vmem [thread:$0]  %s0, 64, %s18, [#allocation4]
    $region5: #{tpu_custom_call.1} parent=1 // pred_fallthru
      _
    // Predicated region
    $region6: #{tpu_custom_call.1} parent=1 // pred_check
      _
    $region7: #{tpu_custom_call.1} parent=1 // pred_check_branch
      %22 = sbr.rel (0) target = $region9
    $region8: #{tpu_custom_call.1} parent=1 // pred_region
      %s24 = ssub.s32 2048, 2048
      %25 = vsyncadd [#allocation7], %s24
      %s26 = sshll.u32 [#allocation6], 4
      %s27 = int_to_ptr.vmem [resolvable:$true] %s26
      %32 = dma.hbm_to_vmem [thread:$0]  %s1, 2048, %s27, [#allocation7], 128, 128, 8
    $region9: #{tpu_custom_call.1} parent=1 // pred_fallthru
      _
    // Predicated region
    $region10: #{tpu_custom_call.1} parent=1 // pred_check
      _
    $region11: #{tpu_custom_call.1} parent=1 // pred_check_branch
      %34 = sbr.rel (0) target = $region13
    $region12: #{tpu_custom_call.1} parent=1 // pred_region
      _
    $region13: #{tpu_custom_call.1} parent=1 // pred_fallthru
      _
    // Predicated region
    $region14: #{tpu_custom_call.1} parent=1 // pred_check
      _
    $region15: #{tpu_custom_call.1} parent=1 // pred_check_branch
      %36 = sbr.rel (0) target = $region17
    $region16: #{tpu_custom_call.1} parent=1 // pred_region
      %37 = dma.done [#allocation4], 64
    $region17: #{tpu_custom_call.1} parent=1 // pred_fallthru
      _
    // Predicated region
    $region18: #{tpu_custom_call.1} parent=1 // pred_check
      _
    $region19: #{tpu_custom_call.1} parent=1 // pred_check_branch
      %39 = sbr.rel (0) target = $region21
    $region20: #{tpu_custom_call.1} parent=1 // pred_region
      %40 = dma.done [#allocation7], 2048
    $region21: #{tpu_custom_call.1} parent=1 // pred_fallthru
      _
    %p42 = scmp.eq.s32.totalorder 0, 0
    // Predicated region
    $region22: #{tpu_custom_call.1} parent=1 // pred_check
      %p43 = pneg %p42
    $region23: #{tpu_custom_call.1} parent=1 // pred_check_branch
      %45 = sbr.rel (%p43) target = $region25
    $region24: #{tpu_custom_call.1} parent=1 // pred_region
      %46 = vst [vmem:[#allocation2] sm:$0xff] 0.0
      %47 = vst [vmem:[#allocation2 + $0x8] sm:$0xff] 0.0
    $region25: #{tpu_custom_call.1} parent=1 // pred_fallthru
      _
    %v48 = vld [vmem:[#allocation2] sm:$0xff]
    %v49 = vld [vmem:[#allocation2 + $0x8] sm:$0xff]
    %v50 = vld [vmem:[#allocation3] sm:$0xf]
    %v51 = vld [vmem:[#allocation6] sm:$0xff]
    %v52 = vld [vmem:[#allocation6 + $0x8] sm:$0xff]
    %v53 = vld [vmem:[#allocation6 + $0x10] sm:$0xff]
    %v54 = vld [vmem:[#allocation6 + $0x18] sm:$0xff]
    %v55 = vld [vmem:[#allocation6 + $0x20] sm:$0xff]
    %v56 = vld [vmem:[#allocation6 + $0x28] sm:$0xff]
    %v57 = vld [vmem:[#allocation6 + $0x30] sm:$0xff]
    %v58 = vld [vmem:[#allocation6 + $0x38] sm:$0xff]
    %v59 = vld [vmem:[#allocation6 + $0x40] sm:$0xff]
    %v60 = vld [vmem:[#allocation6 + $0x48] sm:$0xff]
    %v61 = vld [vmem:[#allocation6 + $0x50] sm:$0xff]
    %v62 = vld [vmem:[#allocation6 + $0x58] sm:$0xff]
    %v63 = vld [vmem:[#allocation6 + $0x60] sm:$0xff]
    %v64 = vld [vmem:[#allocation6 + $0x68] sm:$0xff]
    %v65 = vld [vmem:[#allocation6 + $0x70] sm:$0xff]
    %v66 = vld [vmem:[#allocation6 + $0x78] sm:$0xff]
    %v83 = vunpack.c.l.b16 %v51
    %v84 = vunpack.c.h.b16 %v51
    %v85 = vunpack.c.l.b16 %v52
    %v86 = vunpack.c.h.b16 %v52
    %v87 = vunpack.c.l.b16 %v53
    %v88 = vunpack.c.h.b16 %v53
    %v89 = vunpack.c.l.b16 %v54
    %v90 = vunpack.c.h.b16 %v54
    %v91 = vunpack.c.l.b16 %v55
    %v92 = vunpack.c.h.b16 %v55
    %v93 = vunpack.c.l.b16 %v56
    %v94 = vunpack.c.h.b16 %v56
    %v95 = vunpack.c.l.b16 %v57
    %v96 = vunpack.c.h.b16 %v57
    %v97 = vunpack.c.l.b16 %v58
    %v98 = vunpack.c.h.b16 %v58
    %v99 = vunpack.c.l.b16 %v59
    %v100 = vunpack.c.h.b16 %v59
    %v101 = vunpack.c.l.b16 %v60
    %v102 = vunpack.c.h.b16 %v60
    %v103 = vunpack.c.l.b16 %v61
    %v104 = vunpack.c.h.b16 %v61
    %v105 = vunpack.c.l.b16 %v62
    %v106 = vunpack.c.h.b16 %v62
    %v107 = vunpack.c.l.b16 %v63
    %v108 = vunpack.c.h.b16 %v63
    %v109 = vunpack.c.l.b16 %v64
    %v110 = vunpack.c.h.b16 %v64
    %v111 = vunpack.c.l.b16 %v65
    %v112 = vunpack.c.h.b16 %v65
    %v113 = vunpack.c.l.b16 %v66
    %v114 = vunpack.c.h.b16 %v66
    %v115 = vpack.c.b16 %v85, %v83
    %v116 = vpack.c.b16 %v86, %v84
    %v117 = vpack.c.b16 %v89, %v87
    %v118 = vpack.c.b16 %v90, %v88
    %v119 = vpack.c.b16 %v93, %v91
    %v120 = vpack.c.b16 %v94, %v92
    %v121 = vpack.c.b16 %v97, %v95
    %v122 = vpack.c.b16 %v98, %v96
    %v123 = vpack.c.b16 %v101, %v99
    %v124 = vpack.c.b16 %v102, %v100
    %v125 = vpack.c.b16 %v105, %v103
    %v126 = vpack.c.b16 %v106, %v104
    %v127 = vpack.c.b16 %v109, %v107
    %v128 = vpack.c.b16 %v110, %v108
    %v129 = vpack.c.b16 %v113, %v111
    %v130 = vpack.c.b16 %v114, %v112
    %147 = vmatprep.subr.bf16.mxu0 %v130
    %148 = vmatpush1.bf16.msra.mxu0 %v129
    %149 = vmatprep.subr.bf16.mxu0 %v128
    %150 = vmatpush1.bf16.msra.mxu0 %v127
    %151 = vmatprep.subr.bf16.mxu0 %v126
    %152 = vmatpush1.bf16.msra.mxu0 %v125
    %153 = vmatprep.subr.bf16.mxu0 %v124
    %154 = vmatpush1.bf16.msra.mxu0 %v123
    %155 = vmatprep.subr.bf16.mxu0 %v122
    %156 = vmatpush1.bf16.msra.mxu0 %v121
    %157 = vmatprep.subr.bf16.mxu0 %v120
    %158 = vmatpush1.bf16.msra.mxu0 %v119
    %159 = vmatprep.subr.bf16.mxu0 %v118
    %160 = vmatpush1.bf16.msra.mxu0 %v117
    %161 = vmatprep.subr.bf16.mxu0 %v116
    %162 = vmatpush1.bf16.msra.mxu0 %v115
    %163 = vmatprep.subr.bf16.mxu0 0
    %164 = vmatpush2.bf16.msra.mxu0 0
    %165 = vmatprep.subr.bf16.mxu0 0
    %166 = vmatpush2.bf16.msra.mxu0 0
    %167 = vmatprep.subr.bf16.mxu0 0
    %168 = vmatpush2.bf16.msra.mxu0 0
    %169 = vmatprep.subr.bf16.mxu0 0
    %170 = vmatpush2.bf16.msra.mxu0 0
    %171 = vmatprep.subr.bf16.mxu0 0
    %172 = vmatpush2.bf16.msra.mxu0 0
    %173 = vmatprep.subr.bf16.mxu0 0
    %174 = vmatpush2.bf16.msra.mxu0 0
    %175 = vmatprep.subr.bf16.mxu0 0
    %176 = vmatpush2.bf16.msra.mxu0 0
    %177 = vmatprep.subr.bf16.mxu0 0
    %178 = vmatpush2.bf16.msra.mxu0 0
    %179 = vmatprep.mubr.bf16.mxu0 0
    %180 = vmatmul.mubr.bf16.gmra.mxu0 %v50
    %v181 = vpop.f32.mrf.mxu0
    %v182 = vadd.f32 0.0, %v181
    %v183 = vpop.f32.mrf.mxu0
    %v184 = vadd.f32 0.0, %v183
    %v185 = vpop.f32.mrf.mxu0
    %v186 = vpop.f32.mrf.mxu0
    %187 = vdwg.mxu0
    %v188 = vadd.f32 %v48, %v182
    %v189 = vadd.f32 %v49, %v184
    %190 = vst [vmem:[#allocation2] sm:$0xff] %v188
    %191 = vst [vmem:[#allocation2 + $0x8] sm:$0xff] %v189
    // Predicated region
    $region26: #{tpu_custom_call.1} parent=1 // pred_check
      %p192 = pneg %p42
    $region27: #{tpu_custom_call.1} parent=1 // pred_check_branch
      %194 = sbr.rel (%p192) target = $region29
    $region28: #{tpu_custom_call.1} parent=1 // pred_region
      %v195 = vld [vmem:[#allocation2] sm:$0xff]
      %v196 = vld [vmem:[#allocation2 + $0x8] sm:$0xff]
      %v197 = vld [vmem:[%s2] sm:$0x3]
      %v199 = vlaneseq
      %v200 = vshrl.u32 %v199, 7
      %v201 = vsub.s32 0, %v200
      %v202 = vrot.slane %v197, %v201
      %v203 = vlaneseq
      %v204 = vshrl.u32 %v203, 7
      %v205 = vsub.s32 1, %v204
      %v206 = vrot.slane %v197, %v205
      %v209 = vadd.f32 %v195, %v202
      %v210 = vadd.f32 %v196, %v206
      %211 = vst [vmem:[#allocation8] sm:$0xff] %v209
      %212 = vst [vmem:[#allocation8 + $0x8] sm:$0xff] %v210
    $region29: #{tpu_custom_call.1} parent=1 // pred_fallthru
      _
    // Predicated region
    $region30: #{tpu_custom_call.1} parent=1 // pred_check
      _
    $region31: #{tpu_custom_call.1} parent=1 // pred_check_branch
      %214 = sbr.rel (0) target = $region33
    $region32: #{tpu_custom_call.1} parent=1 // pred_region
      %s216 = ssub.s32 256, 256
      %217 = vsyncadd [#allocation5], %s216
      %s219 = sshll.u32 [#allocation8], 4
      %s220 = int_to_ptr.vmem [resolvable:$true] %s219
      %222 = dma.vmem_to_hbm [thread:$0]  %s220, 256, %s3, [#allocation5]
    $region33: #{tpu_custom_call.1} parent=1 // pred_fallthru
      _
    // Predicated region
    $region34: #{tpu_custom_call.1} parent=1 // pred_check
      _
    $region35: #{tpu_custom_call.1} parent=1 // pred_check_branch
      %224 = sbr.rel (0) target = $region37
    $region36: #{tpu_custom_call.1} parent=1 // pred_region
      %225 = dma.done [#allocation5], 256
    $region37: #{tpu_custom_call.1} parent=1 // pred_fallthru
      _
    %226 = vsyncpa [#allocation4], 1
    %227 = vsyncpa [#allocation7], 1
    %228 = vsyncpa [#allocation5], 1

</llo_original>
